<compile_context>
chip_gen: v5e
topology: v5e:2x2
jax: 0.10.0
libtpu: 0.0.40
codegen_flags: <defaults>
</compile_context>

<pallas_src>
import math

import jax
import jax.numpy as jnp
from jax import lax
from jax.experimental import pallas as pl
from jax.experimental.pallas import tpu as pltpu

Z_DIM = 2
HIDDEN = 64
_LOG_2PI = math.log(2.0 * math.pi)
_NT_DIMS = (((1,), (1,)), ((), ()))   # contract both minor dims: A @ B^T  (q·k^T style)


def _softplus(x):
    # Numerically stable log(1 + exp(x)); matches torch.nn.functional.softplus.
    return jnp.maximum(x, 0.0) + jnp.log(1.0 + jnp.exp(-jnp.abs(x)))


def _log_prob_t(z, mu, sigma, log_sigma):
    # Independent(Normal(mu, sigma), 1).log_prob(z), with the event (z) dim on
    # sublanes and the batch on lanes.  Shapes: (Z, TB) -> (1, TB).
    u = (z - mu) / sigma
    per_dim = -0.5 * u * u - log_sigma - 0.5 * _LOG_2PI
    return jnp.sum(per_dim, axis=0, keepdims=True)


def _ambiguity_kernel(
    text_ref, image_ref, eps1_ref, eps2_ref,
    w1_ref, b1_ref, w2mu_ref, b2mu_ref, w2sg_ref, b2sg_ref,
    out_ref,
):
    xt = text_ref[...]                                        # (TB, 64) features on lanes
    xi = image_ref[...]

    # First Linear(64,64)+ReLU of each encoder (standard orientation, K=64).
    h_t = jnp.maximum(
        jnp.dot(xt, w1_ref[0], preferred_element_type=jnp.float32) + b1_ref[0], 0.0)
    h_i = jnp.maximum(
        jnp.dot(xi, w1_ref[1], preferred_element_type=jnp.float32) + b1_ref[1], 0.0)

    # Head Linears in NT form: (z,64) x (TB,64) contracting the 64-dim of both
    # -> (z, TB).  Result is already "transposed" (batch on lanes), so the whole
    # elementwise tail below is lane-dense with no XLU transpose needed.
    mu1 = lax.dot_general(w2mu_ref[0], h_t, _NT_DIMS,
                          preferred_element_type=jnp.float32) + b2mu_ref[0]
    s1r = lax.dot_general(w2sg_ref[0], h_t, _NT_DIMS,
                          preferred_element_type=jnp.float32) + b2sg_ref[0]
    mu2 = lax.dot_general(w2mu_ref[1], h_i, _NT_DIMS,
                          preferred_element_type=jnp.float32) + b2mu_ref[1]
    s2r = lax.dot_general(w2sg_ref[1], h_i, _NT_DIMS,
                          preferred_element_type=jnp.float32) + b2sg_ref[1]

    s1 = _softplus(s1r) + 1e-7                                # (z, TB)
    s2 = _softplus(s2r) + 1e-7
    log_s1 = jnp.log(s1)
    log_s2 = jnp.log(s2)

    # Reparameterized samples; eps supplied as (z, TB).
    z1 = mu1 + s1 * eps1_ref[...]
    z2 = mu2 + s2 * eps2_ref[...]

    kl_1_2 = _log_prob_t(z1, mu1, s1, log_s1) - _log_prob_t(z1, mu2, s2, log_s2)
    kl_2_1 = _log_prob_t(z2, mu2, s2, log_s2) - _log_prob_t(z2, mu1, s1, log_s1)
    skl = 0.5 * (kl_1_2 + kl_2_1)                             # (1, TB)

    # sigmoid on the (1, TB) row; exp rides the EUP slot; store is lane-dense.
    out_ref[...] = (1.0 / (1.0 + jnp.exp(-skl))).astype(out_ref.dtype)


def _pick_tile_b(B):
    # Single tile up to 2048 rows (blocks equal the array dims -> no masking at
    # all).  Above that, ~B/8 rows per tile rounded to a multiple of 128 and
    # capped at 4096 so per-step overhead stays negligible, several tiles feed
    # v7x's two TensorCores, and double-buffered tiles stay far under VMEM.
    if B <= 2048:
        return B
    t = ((pl.cdiv(B, 8) + 127) // 128) * 128
    return min(4096, t)


def ambiguity_learning_pallas(text, image, params_text, params_image, eps1, eps2,
                              *, tile_b=None):
    """text/image: (B, 64) f32; params_*: (W1(64,64), b1(64,), W2(4,64), b2(4,));
    eps1/eps2: (B, 2) standard-normal noise. Returns skl of shape (B,)."""
    B = text.shape[0]
    if tile_b is None:
        tile_b = _pick_tile_b(B)
    n_tiles = pl.cdiv(B, tile_b)

    w1_t, b1_t, w2_t, b2_t = params_text
    w1_i, b1_i, w2_i, b2_i = params_image

    # Tiny host-side weight packing (two encoders stacked on a leading axis of 2).
    # W1 pre-transposed so the kernel computes x @ W1^T as x @ w1[e]; head weights
    # stay in torch (out, in) layout because the NT matmul contracts the 'in' dim.
    w1 = jnp.stack([jnp.transpose(w1_t), jnp.transpose(w1_i)])          # (2, 64, 64)
    b1 = jnp.stack([b1_t, b1_i]).reshape(2, 1, HIDDEN)                  # (2, 1, 64)
    w2mu = jnp.stack([w2_t[:Z_DIM], w2_i[:Z_DIM]])                      # (2, 2, 64)
    w2sg = jnp.stack([w2_t[Z_DIM:], w2_i[Z_DIM:]])                      # (2, 2, 64)
    b2mu = jnp.stack([b2_t[:Z_DIM], b2_i[:Z_DIM]]).reshape(2, Z_DIM, 1)  # (2, 2, 1)
    b2sg = jnp.stack([b2_t[Z_DIM:], b2_i[Z_DIM:]]).reshape(2, Z_DIM, 1)  # (2, 2, 1)

    # Noise transposed so z sits on sublanes, batch on lanes (tiny (B,2) arrays).
    eps1_T = jnp.transpose(eps1)                                        # (2, B)
    eps2_T = jnp.transpose(eps2)

    data_spec = pl.BlockSpec((tile_b, HIDDEN), lambda i: (i, 0))
    eps_spec = pl.BlockSpec((Z_DIM, tile_b), lambda i: (0, i))

    def resident(shape):
        # Full-array block, same block index every grid step -> stays in VMEM.
        nd = len(shape)
        return pl.BlockSpec(shape, lambda i: (0,) * nd)

    flops = 2 * B * (2 * HIDDEN * HIDDEN + 2 * HIDDEN * 2 * Z_DIM)
    bytes_accessed = 4 * (2 * B * HIDDEN + 2 * B * Z_DIM + B
                          + 2 * (HIDDEN * HIDDEN + HIDDEN
                                 + 2 * Z_DIM * HIDDEN + 2 * Z_DIM))
    transcendentals = 20 * B

    out = pl.pallas_call(
        _ambiguity_kernel,
        out_shape=jax.ShapeDtypeStruct((1, B), jnp.float32),
        grid=(n_tiles,),
        in_specs=[data_spec, data_spec, eps_spec, eps_spec,
                  resident((2, HIDDEN, HIDDEN)), resident((2, 1, HIDDEN)),
                  resident((2, Z_DIM, HIDDEN)), resident((2, Z_DIM, 1)),
                  resident((2, Z_DIM, HIDDEN)), resident((2, Z_DIM, 1))],
        out_specs=pl.BlockSpec((1, tile_b), lambda i: (0, i)),
        compiler_params=pltpu.CompilerParams(
            dimension_semantics=("parallel",)),
        cost_estimate=pl.CostEstimate(
            flops=flops,
            transcendentals=transcendentals,
            bytes_accessed=bytes_accessed),
    )(text, image, eps1_T, eps2_T, w1, b1, w2mu, b2mu, w2sg, b2sg)

    return out[0]


# ----------------------------- pure-JAX reference -----------------------------

def _encoder_ref(x, w1, b1, w2, b2):
    h = jnp.maximum(jnp.dot(x, w1.T, precision="highest") + b1, 0.0)
    p = jnp.dot(h, w2.T, precision="highest") + b2
    mu = p[:, :Z_DIM]
    sigma = _softplus(p[:, Z_DIM:]) + 1e-7
    return mu, sigma


def _log_prob_ref(z, mu, sigma):
    return jnp.sum(-0.5 * ((z - mu) / sigma) ** 2 - jnp.log(sigma)
                   - 0.5 * _LOG_2PI, axis=-1)


def ambiguity_learning_ref(text, image, params_text, params_image, eps1, eps2):
    mu1, s1 = _encoder_ref(text, *params_text)
    mu2, s2 = _encoder_ref(image, *params_image)
    z1 = mu1 + s1 * eps1
    z2 = mu2 + s2 * eps2
    kl_1_2 = _log_prob_ref(z1, mu1, s1) - _log_prob_ref(z1, mu2, s2)
    kl_2_1 = _log_prob_ref(z2, mu2, s2) - _log_prob_ref(z2, mu1, s1)
    return jax.nn.sigmoid(0.5 * (kl_1_2 + kl_2_1))


if __name__ == "__main__":
    key = jax.random.PRNGKey(0)
    keys = jax.random.split(key, 4)

    def init_encoder(k):
        k1, k2, k3, k4 = jax.random.split(k, 4)
        w1 = 0.1 * jax.random.normal(k1, (HIDDEN, HIDDEN), dtype=jnp.float32)
        b1 = 0.1 * jax.random.normal(k2, (HIDDEN,), dtype=jnp.float32)
        w2 = 0.1 * jax.random.normal(k3, (2 * Z_DIM, HIDDEN), dtype=jnp.float32)
        b2 = 0.1 * jax.random.normal(k4, (2 * Z_DIM,), dtype=jnp.float32)
        return (w1, b1, w2, b2)

    params_text = init_encoder(keys[0])
    params_image = init_encoder(keys[1])

    def run_case(B, tile_b, k):
        ks = jax.random.split(k, 4)
        text = jax.random.normal(ks[0], (B, HIDDEN), dtype=jnp.float32)
        image = jax.random.normal(ks[1], (B, HIDDEN), dtype=jnp.float32)
        eps1 = jax.random.normal(ks[2], (B, Z_DIM), dtype=jnp.float32)
        eps2 = jax.random.normal(ks[3], (B, Z_DIM), dtype=jnp.float32)

        y = ambiguity_learning_pallas(text, image, params_text, params_image,
                                      eps1, eps2, tile_b=tile_b)
        jax.block_until_ready(y)

        y_ref = ambiguity_learning_ref(text, image, params_text, params_image,
                                       eps1, eps2)
        assert y.shape == (B,), y.shape
        assert bool(jnp.all(jnp.isfinite(y))), "non-finite output"
        assert jnp.allclose(y, y_ref, atol=1e-4, rtol=1e-4), (y, y_ref)

    # Small demo batch (single tile) + a multi-tile case with a ragged last block.
    run_case(8, None, keys[2])
    run_case(300, 128, keys[3])

    print("KERNEL_OK")
</pallas_src>

<mosaic_0001>
module attributes {stable_mosaic.version = 11 : i64} {
  func.func @_ambiguity_kernel(%arg0: i32, %arg1: memref<8x64xf32, #tpu.memory_space<vmem>>, %arg2: memref<8x64xf32, #tpu.memory_space<vmem>>, %arg3: memref<2x8xf32, #tpu.memory_space<vmem>>, %arg4: memref<2x8xf32, #tpu.memory_space<vmem>>, %arg5: memref<2x64x64xf32, #tpu.memory_space<vmem>>, %arg6: memref<2x1x64xf32, #tpu.memory_space<vmem>>, %arg7: memref<2x2x64xf32, #tpu.memory_space<vmem>>, %arg8: memref<2x2x1xf32, #tpu.memory_space<vmem>>, %arg9: memref<2x2x64xf32, #tpu.memory_space<vmem>>, %arg10: memref<2x2x1xf32, #tpu.memory_space<vmem>>, %arg11: memref<1x8xf32, #tpu.memory_space<vmem>>) attributes {dimension_semantics = [#tpu.dimension_semantics<parallel>], iteration_bounds = array<i64: 1>, scalar_prefetch = 0 : i64, scratch_operands = 0 : i64, tpu.core_type = #tpu.core_type<tc>, window_params = [{transform_indices = @transform_0, window_bounds = array<i64: 8, 64>}, {transform_indices = @transform_1, window_bounds = array<i64: 8, 64>}, {transform_indices = @transform_2, window_bounds = array<i64: 2, 8>}, {transform_indices = @transform_3, window_bounds = array<i64: 2, 8>}, {pipeline_mode = #tpu.pipeline_mode<synchronous>, transform_indices = @transform_4, window_bounds = array<i64: 2, 64, 64>}, {pipeline_mode = #tpu.pipeline_mode<synchronous>, transform_indices = @transform_5, window_bounds = array<i64: 2, 1, 64>}, {pipeline_mode = #tpu.pipeline_mode<synchronous>, transform_indices = @transform_6, window_bounds = array<i64: 2, 2, 64>}, {pipeline_mode = #tpu.pipeline_mode<synchronous>, transform_indices = @transform_7, window_bounds = array<i64: 2, 2, 1>}, {pipeline_mode = #tpu.pipeline_mode<synchronous>, transform_indices = @transform_8, window_bounds = array<i64: 2, 2, 64>}, {pipeline_mode = #tpu.pipeline_mode<synchronous>, transform_indices = @transform_9, window_bounds = array<i64: 2, 2, 1>}, {transform_indices = @transform_10, window_bounds = array<i64: 1, 8>}]} {
    %c0 = arith.constant 0 : index
    %c0_0 = arith.constant 0 : index
    %0 = vector.load %arg1[%c0, %c0_0] : memref<8x64xf32, #tpu.memory_space<vmem>>, vector<8x64xf32>
    %c0_1 = arith.constant 0 : index
    %c0_2 = arith.constant 0 : index
    %1 = vector.load %arg2[%c0_1, %c0_2] : memref<8x64xf32, #tpu.memory_space<vmem>>, vector<8x64xf32>
    %c0_3 = arith.constant 0 : index
    %c0_4 = arith.constant 0 : index
    %c0_5 = arith.constant 0 : index
    %2 = vector.load %arg5[%c0_3, %c0_4, %c0_5] : memref<2x64x64xf32, #tpu.memory_space<vmem>>, vector<1x64x64xf32>
    %3 = vector.shape_cast %2 : vector<1x64x64xf32> to vector<64x64xf32>
    %cst = arith.constant dense<0.000000e+00> : vector<8x64xf32>
    %4 = tpu.matmul %0, %3, %cst {dimension_numbers = #tpu.dot_dimension_numbers<[1], [0], [0], [1], [0, 0, 1, 1], [], []>} : vector<8x64xf32>, vector<64x64xf32>, vector<8x64xf32> -> vector<8x64xf32>
    %c0_6 = arith.constant 0 : index
    %c0_7 = arith.constant 0 : index
    %c0_8 = arith.constant 0 : index
    %5 = vector.load %arg6[%c0_6, %c0_7, %c0_8] : memref<2x1x64xf32, #tpu.memory_space<vmem>>, vector<1x1x64xf32>
    %6 = vector.shape_cast %5 : vector<1x1x64xf32> to vector<1x64xf32>
    %7 = vector.broadcast %6 : vector<1x64xf32> to vector<8x64xf32>
    %8 = arith.addf %4, %7 : vector<8x64xf32>
    %cst_9 = arith.constant 0.000000e+00 : f32
    %9 = vector.broadcast %cst_9 : f32 to vector<8x64xf32>
    %10 = arith.maximumf %8, %9 : vector<8x64xf32>
    %c1 = arith.constant 1 : index
    %c0_10 = arith.constant 0 : index
    %c0_11 = arith.constant 0 : index
    %11 = vector.load %arg5[%c1, %c0_10, %c0_11] : memref<2x64x64xf32, #tpu.memory_space<vmem>>, vector<1x64x64xf32>
    %12 = vector.shape_cast %11 : vector<1x64x64xf32> to vector<64x64xf32>
    %cst_12 = arith.constant dense<0.000000e+00> : vector<8x64xf32>
    %13 = tpu.matmul %1, %12, %cst_12 {dimension_numbers = #tpu.dot_dimension_numbers<[1], [0], [0], [1], [0, 0, 1, 1], [], []>} : vector<8x64xf32>, vector<64x64xf32>, vector<8x64xf32> -> vector<8x64xf32>
    %c1_13 = arith.constant 1 : index
    %c0_14 = arith.constant 0 : index
    %c0_15 = arith.constant 0 : index
    %14 = vector.load %arg6[%c1_13, %c0_14, %c0_15] : memref<2x1x64xf32, #tpu.memory_space<vmem>>, vector<1x1x64xf32>
    %15 = vector.shape_cast %14 : vector<1x1x64xf32> to vector<1x64xf32>
    %16 = vector.broadcast %15 : vector<1x64xf32> to vector<8x64xf32>
    %17 = arith.addf %13, %16 : vector<8x64xf32>
    %cst_16 = arith.constant 0.000000e+00 : f32
    %18 = vector.broadcast %cst_16 : f32 to vector<8x64xf32>
    %19 = arith.maximumf %17, %18 : vector<8x64xf32>
    %c0_17 = arith.constant 0 : index
    %c0_18 = arith.constant 0 : index
    %c0_19 = arith.constant 0 : index
    %20 = vector.load %arg7[%c0_17, %c0_18, %c0_19] : memref<2x2x64xf32, #tpu.memory_space<vmem>>, vector<1x2x64xf32>
    %21 = vector.shape_cast %20 : vector<1x2x64xf32> to vector<2x64xf32>
    %cst_20 = arith.constant dense<0.000000e+00> : vector<2x8xf32>
    %22 = tpu.matmul %21, %10, %cst_20 {dimension_numbers = #tpu.dot_dimension_numbers<[1], [1], [0], [0], [0, 0, 1, 0], [], []>} : vector<2x64xf32>, vector<8x64xf32>, vector<2x8xf32> -> vector<2x8xf32>
    %c0_21 = arith.constant 0 : index
    %c0_22 = arith.constant 0 : index
    %c0_23 = arith.constant 0 : index
    %23 = vector.load %arg8[%c0_21, %c0_22, %c0_23] : memref<2x2x1xf32, #tpu.memory_space<vmem>>, vector<1x2x1xf32>
    %24 = vector.shape_cast %23 : vector<1x2x1xf32> to vector<2x1xf32>
    %25 = vector.broadcast %24 : vector<2x1xf32> to vector<2x8xf32>
    %26 = arith.addf %22, %25 : vector<2x8xf32>
    %c0_24 = arith.constant 0 : index
    %c0_25 = arith.constant 0 : index
    %c0_26 = arith.constant 0 : index
    %27 = vector.load %arg9[%c0_24, %c0_25, %c0_26] : memref<2x2x64xf32, #tpu.memory_space<vmem>>, vector<1x2x64xf32>
    %28 = vector.shape_cast %27 : vector<1x2x64xf32> to vector<2x64xf32>
    %cst_27 = arith.constant dense<0.000000e+00> : vector<2x8xf32>
    %29 = tpu.matmul %28, %10, %cst_27 {dimension_numbers = #tpu.dot_dimension_numbers<[1], [1], [0], [0], [0, 0, 1, 0], [], []>} : vector<2x64xf32>, vector<8x64xf32>, vector<2x8xf32> -> vector<2x8xf32>
    %c0_28 = arith.constant 0 : index
    %c0_29 = arith.constant 0 : index
    %c0_30 = arith.constant 0 : index
    %30 = vector.load %arg10[%c0_28, %c0_29, %c0_30] : memref<2x2x1xf32, #tpu.memory_space<vmem>>, vector<1x2x1xf32>
    %31 = vector.shape_cast %30 : vector<1x2x1xf32> to vector<2x1xf32>
    %32 = vector.broadcast %31 : vector<2x1xf32> to vector<2x8xf32>
    %33 = arith.addf %29, %32 : vector<2x8xf32>
    %c1_31 = arith.constant 1 : index
    %c0_32 = arith.constant 0 : index
    %c0_33 = arith.constant 0 : index
    %34 = vector.load %arg7[%c1_31, %c0_32, %c0_33] : memref<2x2x64xf32, #tpu.memory_space<vmem>>, vector<1x2x64xf32>
    %35 = vector.shape_cast %34 : vector<1x2x64xf32> to vector<2x64xf32>
    %cst_34 = arith.constant dense<0.000000e+00> : vector<2x8xf32>
    %36 = tpu.matmul %35, %19, %cst_34 {dimension_numbers = #tpu.dot_dimension_numbers<[1], [1], [0], [0], [0, 0, 1, 0], [], []>} : vector<2x64xf32>, vector<8x64xf32>, vector<2x8xf32> -> vector<2x8xf32>
    %c1_35 = arith.constant 1 : index
    %c0_36 = arith.constant 0 : index
    %c0_37 = arith.constant 0 : index
    %37 = vector.load %arg8[%c1_35, %c0_36, %c0_37] : memref<2x2x1xf32, #tpu.memory_space<vmem>>, vector<1x2x1xf32>
    %38 = vector.shape_cast %37 : vector<1x2x1xf32> to vector<2x1xf32>
    %39 = vector.broadcast %38 : vector<2x1xf32> to vector<2x8xf32>
    %40 = arith.addf %36, %39 : vector<2x8xf32>
    %c1_38 = arith.constant 1 : index
    %c0_39 = arith.constant 0 : index
    %c0_40 = arith.constant 0 : index
    %41 = vector.load %arg9[%c1_38, %c0_39, %c0_40] : memref<2x2x64xf32, #tpu.memory_space<vmem>>, vector<1x2x64xf32>
    %42 = vector.shape_cast %41 : vector<1x2x64xf32> to vector<2x64xf32>
    %cst_41 = arith.constant dense<0.000000e+00> : vector<2x8xf32>
    %43 = tpu.matmul %42, %19, %cst_41 {dimension_numbers = #tpu.dot_dimension_numbers<[1], [1], [0], [0], [0, 0, 1, 0], [], []>} : vector<2x64xf32>, vector<8x64xf32>, vector<2x8xf32> -> vector<2x8xf32>
    %c1_42 = arith.constant 1 : index
    %c0_43 = arith.constant 0 : index
    %c0_44 = arith.constant 0 : index
    %44 = vector.load %arg10[%c1_42, %c0_43, %c0_44] : memref<2x2x1xf32, #tpu.memory_space<vmem>>, vector<1x2x1xf32>
    %45 = vector.shape_cast %44 : vector<1x2x1xf32> to vector<2x1xf32>
    %46 = vector.broadcast %45 : vector<2x1xf32> to vector<2x8xf32>
    %47 = arith.addf %43, %46 : vector<2x8xf32>
    %cst_45 = arith.constant 0.000000e+00 : f32
    %48 = vector.broadcast %cst_45 : f32 to vector<2x8xf32>
    %49 = arith.maximumf %33, %48 : vector<2x8xf32>
    %50 = math.absf %33 : vector<2x8xf32>
    %cst_46 = arith.constant 0.000000e+00 : f32
    %51 = vector.broadcast %cst_46 : f32 to vector<2x8xf32>
    %52 = arith.subf %51, %50 : vector<2x8xf32>
    %53 = math.exp %52 : vector<2x8xf32>
    %cst_47 = arith.constant 1.000000e+00 : f32
    %54 = vector.broadcast %cst_47 : f32 to vector<2x8xf32>
    %55 = arith.addf %54, %53 : vector<2x8xf32>
    %56 = math.log %55 : vector<2x8xf32>
    %57 = arith.addf %49, %56 : vector<2x8xf32>
    %cst_48 = arith.constant 1.000000e-07 : f32
    %58 = vector.broadcast %cst_48 : f32 to vector<2x8xf32>
    %59 = arith.addf %57, %58 : vector<2x8xf32>
    %cst_49 = arith.constant 0.000000e+00 : f32
    %60 = vector.broadcast %cst_49 : f32 to vector<2x8xf32>
    %61 = arith.maximumf %47, %60 : vector<2x8xf32>
    %62 = math.absf %47 : vector<2x8xf32>
    %cst_50 = arith.constant 0.000000e+00 : f32
    %63 = vector.broadcast %cst_50 : f32 to vector<2x8xf32>
    %64 = arith.subf %63, %62 : vector<2x8xf32>
    %65 = math.exp %64 : vector<2x8xf32>
    %cst_51 = arith.constant 1.000000e+00 : f32
    %66 = vector.broadcast %cst_51 : f32 to vector<2x8xf32>
    %67 = arith.addf %66, %65 : vector<2x8xf32>
    %68 = math.log %67 : vector<2x8xf32>
    %69 = arith.addf %61, %68 : vector<2x8xf32>
    %cst_52 = arith.constant 1.000000e-07 : f32
    %70 = vector.broadcast %cst_52 : f32 to vector<2x8xf32>
    %71 = arith.addf %69, %70 : vector<2x8xf32>
    %72 = math.log %59 : vector<2x8xf32>
    %73 = math.log %71 : vector<2x8xf32>
    %c0_53 = arith.constant 0 : index
    %c0_54 = arith.constant 0 : index
    %74 = vector.load %arg3[%c0_53, %c0_54] : memref<2x8xf32, #tpu.memory_space<vmem>>, vector<2x8xf32>
    %75 = arith.mulf %59, %74 : vector<2x8xf32>
    %76 = arith.addf %26, %75 : vector<2x8xf32>
    %c0_55 = arith.constant 0 : index
    %c0_56 = arith.constant 0 : index
    %77 = vector.load %arg4[%c0_55, %c0_56] : memref<2x8xf32, #tpu.memory_space<vmem>>, vector<2x8xf32>
    %78 = arith.mulf %71, %77 : vector<2x8xf32>
    %79 = arith.addf %40, %78 : vector<2x8xf32>
    %80 = arith.subf %76, %26 : vector<2x8xf32>
    %81 = arith.divf %80, %59 : vector<2x8xf32>
    %cst_57 = arith.constant -5.000000e-01 : f32
    %82 = vector.broadcast %cst_57 : f32 to vector<2x8xf32>
    %83 = arith.mulf %82, %81 : vector<2x8xf32>
    %84 = arith.mulf %83, %81 : vector<2x8xf32>
    %85 = arith.subf %84, %72 : vector<2x8xf32>
    %cst_58 = arith.constant 0.918938517 : f32
    %86 = vector.broadcast %cst_58 : f32 to vector<2x8xf32>
    %87 = arith.subf %85, %86 : vector<2x8xf32>
    %cst_59 = arith.constant dense<0.000000e+00> : vector<8xf32>
    %88 = vector.multi_reduction <add>, %87, %cst_59 [0] : vector<2x8xf32> to vector<8xf32>
    %89 = vector.shape_cast %88 : vector<8xf32> to vector<1x8xf32>
    %90 = arith.subf %76, %40 : vector<2x8xf32>
    %91 = arith.divf %90, %71 : vector<2x8xf32>
    %cst_60 = arith.constant -5.000000e-01 : f32
    %92 = vector.broadcast %cst_60 : f32 to vector<2x8xf32>
    %93 = arith.mulf %92, %91 : vector<2x8xf32>
    %94 = arith.mulf %93, %91 : vector<2x8xf32>
    %95 = arith.subf %94, %73 : vector<2x8xf32>
    %cst_61 = arith.constant 0.918938517 : f32
    %96 = vector.broadcast %cst_61 : f32 to vector<2x8xf32>
    %97 = arith.subf %95, %96 : vector<2x8xf32>
    %cst_62 = arith.constant dense<0.000000e+00> : vector<8xf32>
    %98 = vector.multi_reduction <add>, %97, %cst_62 [0] : vector<2x8xf32> to vector<8xf32>
    %99 = vector.shape_cast %98 : vector<8xf32> to vector<1x8xf32>
    %100 = arith.subf %89, %99 : vector<1x8xf32>
    %101 = arith.subf %79, %40 : vector<2x8xf32>
    %102 = arith.divf %101, %71 : vector<2x8xf32>
    %cst_63 = arith.constant -5.000000e-01 : f32
    %103 = vector.broadcast %cst_63 : f32 to vector<2x8xf32>
    %104 = arith.mulf %103, %102 : vector<2x8xf32>
    %105 = arith.mulf %104, %102 : vector<2x8xf32>
    %106 = arith.subf %105, %73 : vector<2x8xf32>
    %cst_64 = arith.constant 0.918938517 : f32
    %107 = vector.broadcast %cst_64 : f32 to vector<2x8xf32>
    %108 = arith.subf %106, %107 : vector<2x8xf32>
    %cst_65 = arith.constant dense<0.000000e+00> : vector<8xf32>
    %109 = vector.multi_reduction <add>, %108, %cst_65 [0] : vector<2x8xf32> to vector<8xf32>
    %110 = vector.shape_cast %109 : vector<8xf32> to vector<1x8xf32>
    %111 = arith.subf %79, %26 : vector<2x8xf32>
    %112 = arith.divf %111, %59 : vector<2x8xf32>
    %cst_66 = arith.constant -5.000000e-01 : f32
    %113 = vector.broadcast %cst_66 : f32 to vector<2x8xf32>
    %114 = arith.mulf %113, %112 : vector<2x8xf32>
    %115 = arith.mulf %114, %112 : vector<2x8xf32>
    %116 = arith.subf %115, %72 : vector<2x8xf32>
    %cst_67 = arith.constant 0.918938517 : f32
    %117 = vector.broadcast %cst_67 : f32 to vector<2x8xf32>
    %118 = arith.subf %116, %117 : vector<2x8xf32>
    %cst_68 = arith.constant dense<0.000000e+00> : vector<8xf32>
    %119 = vector.multi_reduction <add>, %118, %cst_68 [0] : vector<2x8xf32> to vector<8xf32>
    %120 = vector.shape_cast %119 : vector<8xf32> to vector<1x8xf32>
    %121 = arith.subf %110, %120 : vector<1x8xf32>
    %122 = arith.addf %100, %121 : vector<1x8xf32>
    %cst_69 = arith.constant 5.000000e-01 : f32
    %123 = vector.broadcast %cst_69 : f32 to vector<1x8xf32>
    %124 = arith.mulf %123, %122 : vector<1x8xf32>
    %cst_70 = arith.constant 0.000000e+00 : f32
    %125 = vector.broadcast %cst_70 : f32 to vector<1x8xf32>
    %126 = arith.subf %125, %124 : vector<1x8xf32>
    %127 = math.exp %126 : vector<1x8xf32>
    %cst_71 = arith.constant 1.000000e+00 : f32
    %128 = vector.broadcast %cst_71 : f32 to vector<1x8xf32>
    %129 = arith.addf %128, %127 : vector<1x8xf32>
    %cst_72 = arith.constant 1.000000e+00 : f32
    %130 = vector.broadcast %cst_72 : f32 to vector<1x8xf32>
    %131 = arith.divf %130, %129 : vector<1x8xf32>
    %c0_73 = arith.constant 0 : index
    %c0_74 = arith.constant 0 : index
    %132 = vector.load %arg11[%c0_73, %c0_74] : memref<1x8xf32, #tpu.memory_space<vmem>>, vector<1x8xf32>
    tpu.vector_store %arg11[%c0_73, %c0_74], %131 {strides = array<i32>} : memref<1x8xf32, #tpu.memory_space<vmem>>, vector<1x8xf32>,
    return
  }
  func.func @transform_0(%arg0: i32) -> (i32, i32) {
    %c0_i32 = arith.constant 0 : i32
    %c0_i32_0 = arith.constant 0 : i32
    return %arg0, %c0_i32 : i32, i32
  }
  func.func @transform_1(%arg0: i32) -> (i32, i32) {
    %c0_i32 = arith.constant 0 : i32
    %c0_i32_0 = arith.constant 0 : i32
    return %arg0, %c0_i32 : i32, i32
  }
  func.func @transform_2(%arg0: i32) -> (i32, i32) {
    %c0_i32 = arith.constant 0 : i32
    %c0_i32_0 = arith.constant 0 : i32
    return %c0_i32, %arg0 : i32, i32
  }
  func.func @transform_3(%arg0: i32) -> (i32, i32) {
    %c0_i32 = arith.constant 0 : i32
    %c0_i32_0 = arith.constant 0 : i32
    return %c0_i32, %arg0 : i32, i32
  }
  func.func @transform_4(%arg0: i32) -> (i32, i32, i32) {
    %c0_i32 = arith.constant 0 : i32
    %c0_i32_0 = arith.constant 0 : i32
    %c0_i32_1 = arith.constant 0 : i32
    %c0_i32_2 = arith.constant 0 : i32
    return %c0_i32, %c0_i32_0, %c0_i32_1 : i32, i32, i32
  }
  func.func @transform_5(%arg0: i32) -> (i32, i32, i32) {
    %c0_i32 = arith.constant 0 : i32
    %c0_i32_0 = arith.constant 0 : i32
    %c0_i32_1 = arith.constant 0 : i32
    %c0_i32_2 = arith.constant 0 : i32
    return %c0_i32, %c0_i32_0, %c0_i32_1 : i32, i32, i32
  }
  func.func @transform_6(%arg0: i32) -> (i32, i32, i32) {
    %c0_i32 = arith.constant 0 : i32
    %c0_i32_0 = arith.constant 0 : i32
    %c0_i32_1 = arith.constant 0 : i32
    %c0_i32_2 = arith.constant 0 : i32
    return %c0_i32, %c0_i32_0, %c0_i32_1 : i32, i32, i32
  }
  func.func @transform_7(%arg0: i32) -> (i32, i32, i32) {
    %c0_i32 = arith.constant 0 : i32
    %c0_i32_0 = arith.constant 0 : i32
    %c0_i32_1 = arith.constant 0 : i32
    %c0_i32_2 = arith.constant 0 : i32
    return %c0_i32, %c0_i32_0, %c0_i32_1 : i32, i32, i32
  }
  func.func @transform_8(%arg0: i32) -> (i32, i32, i32) {
    %c0_i32 = arith.constant 0 : i32
    %c0_i32_0 = arith.constant 0 : i32
    %c0_i32_1 = arith.constant 0 : i32
    %c0_i32_2 = arith.constant 0 : i32
    return %c0_i32, %c0_i32_0, %c0_i32_1 : i32, i32, i32
  }
  func.func @transform_9(%arg0: i32) -> (i32, i32, i32) {
    %c0_i32 = arith.constant 0 : i32
    %c0_i32_0 = arith.constant 0 : i32
    %c0_i32_1 = arith.constant 0 : i32
    %c0_i32_2 = arith.constant 0 : i32
    return %c0_i32, %c0_i32_0, %c0_i32_1 : i32, i32, i32
  }
  func.func @transform_10(%arg0: i32) -> (i32, i32) {
    %c0_i32 = arith.constant 0 : i32
    %c0_i32_0 = arith.constant 0 : i32
    return %c0_i32, %arg0 : i32, i32
  }
}

</mosaic_0001>

<llo_original>
// kernel: tpu_custom_call.1
$region0: #{tpu_custom_call.1}
  #allocation0 [shape = 'u32[]', space=smem, size = 0x4, offset = 0x4, fixed_abs, tag = 'smem constant byte address 0x4 - core index']
  #allocation1 [shape = 'u32[72,128]{1,0:T(1,128)}', space=vmem, size = 0x9000, scoped, tag = 'internal scratch']
  %s0 = inlined_call_operand.vmem [shape: f32[8,64], index: 0, kind: input, shape index: {}]
  %s1 = inlined_call_operand.hbm [shape: f32[8,64], index: 1, kind: input, shape index: {}]
  %s2 = inlined_call_operand.hbm [shape: f32[2,8], index: 2, kind: input, shape index: {}]
  %s3 = inlined_call_operand.hbm [shape: f32[2,8], index: 3, kind: input, shape index: {}]
  %s4 = inlined_call_operand.hbm [shape: f32[2,64,64], index: 4, kind: input, shape index: {}]
  %s5 = inlined_call_operand.hbm [shape: f32[2,1,64], index: 5, kind: input, shape index: {}]
  %s6 = inlined_call_operand.vmem [shape: f32[2,2,64], index: 6, kind: input, shape index: {}]
  %s7 = inlined_call_operand.vmem [shape: f32[2,2,1], index: 7, kind: input, shape index: {}]
  %s8 = inlined_call_operand.vmem [shape: f32[2,2,64], index: 8, kind: input, shape index: {}]
  %s9 = inlined_call_operand.vmem [shape: f32[2,2,1], index: 9, kind: input, shape index: {}]
  %s10 = inlined_call_operand.hbm [shape: f32[1,8], index: 10, kind: output, shape index: {}]
  %s11 = sld [smem:[#allocation0]]
  $region70: #{tpu_custom_call.1} parent=0
    _
  %s13 = ssub.s32 1, %s11
  %s14 = scalar_select 0, %s13, %s11
  $region1: #{tpu_custom_call.1} parent=0
    #allocation2 [shape = 'u8[4096]{0}', space=vmem, size = 0x1000, scoped, tag = 'input window, operand 1, single buffered']
    #allocation3 [shape = 's32[1]{0}', space=sflag, size = 0x4, scoped, tag = 'scoped memory for tpu_custom_call.1']
    #allocation4 [shape = 's32[1]{0}', space=sflag, size = 0x4, scoped, tag = 'scoped memory for tpu_custom_call.1']
    #allocation5 [shape = 'u8[1024]{0}', space=vmem, size = 0x400, scoped, tag = 'input window, operand 2, single buffered']
    #allocation6 [shape = 's32[1]{0}', space=sflag, size = 0x4, scoped, tag = 'scoped memory for tpu_custom_call.1']
    #allocation7 [shape = 'u8[1024]{0}', space=vmem, size = 0x400, scoped, tag = 'input window, operand 3, single buffered']
    #allocation8 [shape = 'u8[65536]{0}', space=vmem, size = 0x10000, scoped, tag = 'input window, operand 4, single buffered']
    #allocation9 [shape = 's32[1]{0}', space=sflag, size = 0x4, scoped, tag = 'scoped memory for tpu_custom_call.1']
    #allocation10 [shape = 'u8[1024]{0}', space=vmem, size = 0x400, scoped, tag = 'input window, operand 5, single buffered']
    #allocation11 [shape = 'u8[512]{0}', space=vmem, size = 0x400, scoped, tag = 'output window, operand 0, single buffered']
    %15 = vsyncpa [#allocation3], 0
    %16 = vsyncpa [#allocation6], 0
    %17 = vsyncpa [#allocation9], 0
    %18 = vsyncpa [#allocation4], 0
    // Predicated region
    $region2: #{tpu_custom_call.1} parent=1 // pred_check
      _
    $region3: #{tpu_custom_call.1} parent=1 // pred_check_branch
      %20 = sbr.rel (0) target = $region5
    $region4: #{tpu_custom_call.1} parent=1 // pred_region
      _
    $region5: #{tpu_custom_call.1} parent=1 // pred_fallthru
      _
    // Predicated region
    $region6: #{tpu_custom_call.1} parent=1 // pred_check
      _
    $region7: #{tpu_custom_call.1} parent=1 // pred_check_branch
      %22 = sbr.rel (0) target = $region9
    $region8: #{tpu_custom_call.1} parent=1 // pred_region
      %24 = vsyncadd [#allocation3], 0
      %s26 = sshll.u32 %s1, 4
      %s27 = int_to_ptr.hbm [resolvable:$true] %s26
      %s28 = sshll.u32 [#allocation2], 4
      %s29 = int_to_ptr.vmem [resolvable:$true] %s28
      %31 = dma.hbm_to_vmem [thread:$0]  %s27, 128, %s29, [#allocation3]
    $region9: #{tpu_custom_call.1} parent=1 // pred_fallthru
      _
    // Predicated region
    $region10: #{tpu_custom_call.1} parent=1 // pred_check
      _
    $region11: #{tpu_custom_call.1} parent=1 // pred_check_branch
      %33 = sbr.rel (0) target = $region13
    $region12: #{tpu_custom_call.1} parent=1 // pred_region
      %35 = vsyncadd [#allocation6], 0
      %s37 = sshll.u32 %s2, 4
      %s38 = int_to_ptr.hbm [resolvable:$true] %s37
      %s39 = sshll.u32 [#allocation5], 4
      %s40 = int_to_ptr.vmem [resolvable:$true] %s39
      %42 = dma.hbm_to_vmem [thread:$0]  %s38, 32, %s40, [#allocation6]
    $region13: #{tpu_custom_call.1} parent=1 // pred_fallthru
      _
    // Predicated region
    $region14: #{tpu_custom_call.1} parent=1 // pred_check
      _
    $region15: #{tpu_custom_call.1} parent=1 // pred_check_branch
      %44 = sbr.rel (0) target = $region17
    $region16: #{tpu_custom_call.1} parent=1 // pred_region
      %46 = vsyncadd [#allocation6], 0
      %s48 = sshll.u32 %s3, 4
      %s49 = int_to_ptr.hbm [resolvable:$true] %s48
      %s50 = sshll.u32 [#allocation7], 4
      %s51 = int_to_ptr.vmem [resolvable:$true] %s50
      %53 = dma.hbm_to_vmem [thread:$0]  %s49, 32, %s51, [#allocation6]
    $region17: #{tpu_custom_call.1} parent=1 // pred_fallthru
      _
    // Predicated region
    $region18: #{tpu_custom_call.1} parent=1 // pred_check
      _
    $region19: #{tpu_custom_call.1} parent=1 // pred_check_branch
      %55 = sbr.rel (0) target = $region21
    $region20: #{tpu_custom_call.1} parent=1 // pred_region
      %57 = vsyncadd [#allocation9], 0
      %s58 = sshll.u32 %s4, 4
      %s59 = int_to_ptr.hbm [resolvable:$true] %s58
      %s60 = sshll.u32 [#allocation8], 4
      %s61 = int_to_ptr.vmem [resolvable:$true] %s60
      %66 = dma.hbm_to_vmem [thread:$0]  %s59, 2048, %s61, [#allocation9], 128, 128, 8
    $region21: #{tpu_custom_call.1} parent=1 // pred_fallthru
      _
    // Predicated region
    $region22: #{tpu_custom_call.1} parent=1 // pred_check
      _
    $region23: #{tpu_custom_call.1} parent=1 // pred_check_branch
      %68 = sbr.rel (0) target = $region25
    $region24: #{tpu_custom_call.1} parent=1 // pred_region
      %70 = vsyncadd [#allocation9], 0
      %s71 = sshll.u32 %s5, 4
      %s72 = int_to_ptr.hbm [resolvable:$true] %s71
      %s73 = sshll.u32 [#allocation10], 4
      %s74 = int_to_ptr.vmem [resolvable:$true] %s73
      %79 = dma.hbm_to_vmem [thread:$0]  %s72, 32, %s74, [#allocation9], 16, 16, 1
    $region25: #{tpu_custom_call.1} parent=1 // pred_fallthru
      _
    // Predicated region
    $region26: #{tpu_custom_call.1} parent=1 // pred_check
      _
    $region27: #{tpu_custom_call.1} parent=1 // pred_check_branch
      %81 = sbr.rel (0) target = $region29
    $region28: #{tpu_custom_call.1} parent=1 // pred_region
      _
    $region29: #{tpu_custom_call.1} parent=1 // pred_fallthru
      _
    // Predicated region
    $region30: #{tpu_custom_call.1} parent=1 // pred_check
      _
    $region31: #{tpu_custom_call.1} parent=1 // pred_check_branch
      %83 = sbr.rel (0) target = $region33
    $region32: #{tpu_custom_call.1} parent=1 // pred_region
      _
    $region33: #{tpu_custom_call.1} parent=1 // pred_fallthru
      _
    // Predicated region
    $region34: #{tpu_custom_call.1} parent=1 // pred_check
      _
    $region35: #{tpu_custom_call.1} parent=1 // pred_check_branch
      %85 = sbr.rel (0) target = $region37
    $region36: #{tpu_custom_call.1} parent=1 // pred_region
      _
    $region37: #{tpu_custom_call.1} parent=1 // pred_fallthru
      _
    // Predicated region
    $region38: #{tpu_custom_call.1} parent=1 // pred_check
      _
    $region39: #{tpu_custom_call.1} parent=1 // pred_check_branch
      %87 = sbr.rel (0) target = $region41
    $region40: #{tpu_custom_call.1} parent=1 // pred_region
      _
    $region41: #{tpu_custom_call.1} parent=1 // pred_fallthru
      _
    // Predicated region
    $region42: #{tpu_custom_call.1} parent=1 // pred_check
      _
    $region43: #{tpu_custom_call.1} parent=1 // pred_check_branch
      %89 = sbr.rel (0) target = $region45
    $region44: #{tpu_custom_call.1} parent=1 // pred_region
      %91 = dma.done [#allocation3], 128
    $region45: #{tpu_custom_call.1} parent=1 // pred_fallthru
      _
    // Predicated region
    $region46: #{tpu_custom_call.1} parent=1 // pred_check
      _
    $region47: #{tpu_custom_call.1} parent=1 // pred_check_branch
      %93 = sbr.rel (0) target = $region49
    $region48: #{tpu_custom_call.1} parent=1 // pred_region
      %95 = dma.done [#allocation6], 32
    $region49: #{tpu_custom_call.1} parent=1 // pred_fallthru
      _
    // Predicated region
    $region50: #{tpu_custom_call.1} parent=1 // pred_check
      _
    $region51: #{tpu_custom_call.1} parent=1 // pred_check_branch
      %97 = sbr.rel (0) target = $region53
    $region52: #{tpu_custom_call.1} parent=1 // pred_region
      %99 = dma.done [#allocation6], 32
    $region53: #{tpu_custom_call.1} parent=1 // pred_fallthru
      _
    // Predicated region
    $region54: #{tpu_custom_call.1} parent=1 // pred_check
      _
    $region55: #{tpu_custom_call.1} parent=1 // pred_check_branch
      %101 = sbr.rel (0) target = $region57
    $region56: #{tpu_custom_call.1} parent=1 // pred_region
      %103 = dma.done [#allocation9], 2048
    $region57: #{tpu_custom_call.1} parent=1 // pred_fallthru
      _
    // Predicated region
    $region58: #{tpu_custom_call.1} parent=1 // pred_check
      _
    $region59: #{tpu_custom_call.1} parent=1 // pred_check_branch
      %105 = sbr.rel (0) target = $region61
    $region60: #{tpu_custom_call.1} parent=1 // pred_region
      %107 = dma.done [#allocation9], 32
    $region61: #{tpu_custom_call.1} parent=1 // pred_fallthru
      _
    %v108 = vld [vmem:[%s0] sm:$0xff]
    %v109 = vld [vmem:[#allocation2] sm:$0xff]
    %v110 = vld [vmem:[#allocation8] sm:$0xff]
    %v111 = vld [vmem:[#allocation8 + $0x8] sm:$0xff]
    %v112 = vld [vmem:[#allocation8 + $0x10] sm:$0xff]
    %v113 = vld [vmem:[#allocation8 + $0x18] sm:$0xff]
    %v114 = vld [vmem:[#allocation8 + $0x20] sm:$0xff]
    %v115 = vld [vmem:[#allocation8 + $0x28] sm:$0xff]
    %v116 = vld [vmem:[#allocation8 + $0x30] sm:$0xff]
    %v117 = vld [vmem:[#allocation8 + $0x38] sm:$0xff]
    %v118 = vld [vmem:[#allocation10] sm:$0x1]
    %v120 = vperm.slane %v118, 0
    %vm122 = vcmask 523264
    %v124 = vsel %vm122, %v108, 0
    %126 = vmatpush.msra.mxu0 0.0
    %127 = vmatpush.msra.mxu0 0.0
    %128 = vmatpush.msra.mxu0 0.0
    %129 = vmatpush.msra.mxu0 0.0
    %130 = vmatpush.msra.mxu0 0.0
    %131 = vmatpush.msra.mxu0 0.0
    %132 = vmatpush.msra.mxu0 0.0
    %133 = vmatpush.msra.mxu0 0.0
    %134 = vmatpush.msra.mxu0 %v117
    %135 = vmatpush.msra.mxu0 %v116
    %136 = vmatpush.msra.mxu0 %v115
    %137 = vmatpush.msra.mxu0 %v114
    %138 = vmatpush.msra.mxu0 %v113
    %139 = vmatpush.msra.mxu0 %v112
    %140 = vmatpush.msra.mxu0 %v111
    %141 = vmatpush.msra.mxu0 %v110
    %142 = vmatmul.f32.gmra.mxu0 %v124
    %v143 = vpop.f32.mrf.mxu0
    %v144 = vadd.f32 %v120, %v143
    %145 = vdwg.mxu0
    %v146 = vmax.f32 %v144, 0.0
    %s147 = scalar_lea.vmem [#allocation8], 64
    %v148 = vld [vmem:[%s147] sm:$0xff]
    %v149 = vld [vmem:[%s147 + $0x8] sm:$0xff]
    %v150 = vld [vmem:[%s147 + $0x10] sm:$0xff]
    %v151 = vld [vmem:[%s147 + $0x18] sm:$0xff]
    %v152 = vld [vmem:[%s147 + $0x20] sm:$0xff]
    %v153 = vld [vmem:[%s147 + $0x28] sm:$0xff]
    %v154 = vld [vmem:[%s147 + $0x30] sm:$0xff]
    %v155 = vld [vmem:[%s147 + $0x38] sm:$0xff]
    %s156 = scalar_lea.vmem [#allocation10], 1
    %v157 = vld [vmem:[%s156] sm:$0x1]
    %v159 = vperm.slane %v157, 0
    %v162 = vsel %vm122, %v109, 0
    %164 = vmatpush.msra.mxu0 0.0
    %165 = vmatpush.msra.mxu0 0.0
    %166 = vmatpush.msra.mxu0 0.0
    %167 = vmatpush.msra.mxu0 0.0
    %168 = vmatpush.msra.mxu0 0.0
    %169 = vmatpush.msra.mxu0 0.0
    %170 = vmatpush.msra.mxu0 0.0
    %171 = vmatpush.msra.mxu0 0.0
    %172 = vmatpush.msra.mxu0 %v155
    %173 = vmatpush.msra.mxu0 %v154
    %174 = vmatpush.msra.mxu0 %v153
    %175 = vmatpush.msra.mxu0 %v152
    %176 = vmatpush.msra.mxu0 %v151
    %177 = vmatpush.msra.mxu0 %v150
    %178 = vmatpush.msra.mxu0 %v149
    %179 = vmatpush.msra.mxu0 %v148
    %180 = vmatmul.f32.gmra.mxu0 %v162
    %v181 = vpop.f32.mrf.mxu0
    %v182 = vadd.f32 %v159, %v181
    %183 = vdwg.mxu0
    %v184 = vmax.f32 %v182, 0.0
    %v185 = vld [vmem:[%s6] sm:$0x3]
    %v186 = vld [vmem:[%s7] sm:$0x3]
    %188 = vset.pattern.permute.xlu0 0
    %189 = vperm.xlu0 %188, %v186
    %v190 = vpop.permute.xlu0 %189
    %v193 = vsel %vm122, %v185, 0
    %v196 = vsel %vm122, %v146, 0
    %198 = vmatpush.xpose.msra.mxu0 0.0
    %199 = vmatpush.xpose.msra.mxu0 0.0
    %200 = vmatpush.xpose.msra.mxu0 0.0
    %201 = vmatpush.xpose.msra.mxu0 0.0
    %202 = vmatpush.xpose.msra.mxu0 0.0
    %203 = vmatpush.xpose.msra.mxu0 0.0
    %204 = vmatpush.xpose.msra.mxu0 0.0
    %205 = vmatpush.xpose.msra.mxu0 0.0
    %206 = vmatpush.xpose.msra.mxu0 0.0
    %207 = vmatpush.xpose.msra.mxu0 0.0
    %208 = vmatpush.xpose.msra.mxu0 0.0
    %209 = vmatpush.xpose.msra.mxu0 0.0
    %210 = vmatpush.xpose.msra.mxu0 0.0
    %211 = vmatpush.xpose.msra.mxu0 0.0
    %212 = vmatpush.xpose.msra.mxu0 0.0
    %213 = vmatpush.xpose.msra.mxu0 %v196
    %214 = vmatmul.f32.gmra.mxu0 %v193
    %v215 = vpop.f32.mrf.mxu0
    %v216 = vadd.f32 %v190, %v215
    %217 = vdwg.mxu0
    %v218 = vld [vmem:[%s8] sm:$0x3]
    %v219 = vld [vmem:[%s9] sm:$0x3]
    %221 = vset.pattern.permute.xlu0 0
    %222 = vperm.xlu0 %221, %v219
    %v223 = vpop.permute.xlu0 %222
    %v226 = vsel %vm122, %v218, 0
    %228 = vmatpush.xpose.msra.mxu0 0.0
    %229 = vmatpush.xpose.msra.mxu0 0.0
    %230 = vmatpush.xpose.msra.mxu0 0.0
    %231 = vmatpush.xpose.msra.mxu0 0.0
    %232 = vmatpush.xpose.msra.mxu0 0.0
    %233 = vmatpush.xpose.msra.mxu0 0.0
    %234 = vmatpush.xpose.msra.mxu0 0.0
    %235 = vmatpush.xpose.msra.mxu0 0.0
    %236 = vmatpush.xpose.msra.mxu0 0.0
    %237 = vmatpush.xpose.msra.mxu0 0.0
    %238 = vmatpush.xpose.msra.mxu0 0.0
    %239 = vmatpush.xpose.msra.mxu0 0.0
    %240 = vmatpush.xpose.msra.mxu0 0.0
    %241 = vmatpush.xpose.msra.mxu0 0.0
    %242 = vmatpush.xpose.msra.mxu0 0.0
    %243 = vmatpush.xpose.msra.mxu0 %v196
    %244 = vmatmul.f32.gmra.mxu0 %v226
    %v245 = vpop.f32.mrf.mxu0
    %v246 = vadd.f32 %v223, %v245
    %247 = vdwg.mxu0
    %s248 = scalar_lea.vmem %s6, 2
    %v249 = vld [vmem:[%s248] sm:$0x3]
    %s250 = scalar_lea.vmem %s7, 2
    %v251 = vld [vmem:[%s250] sm:$0x3]
    %253 = vset.pattern.permute.xlu0 0
    %254 = vperm.xlu0 %253, %v251
    %v255 = vpop.permute.xlu0 %254
    %v258 = vsel %vm122, %v249, 0
    %v261 = vsel %vm122, %v184, 0
    %263 = vmatpush.xpose.msra.mxu0 0.0
    %264 = vmatpush.xpose.msra.mxu0 0.0
    %265 = vmatpush.xpose.msra.mxu0 0.0
    %266 = vmatpush.xpose.msra.mxu0 0.0
    %267 = vmatpush.xpose.msra.mxu0 0.0
    %268 = vmatpush.xpose.msra.mxu0 0.0
    %269 = vmatpush.xpose.msra.mxu0 0.0
    %270 = vmatpush.xpose.msra.mxu0 0.0
    %271 = vmatpush.xpose.msra.mxu0 0.0
    %272 = vmatpush.xpose.msra.mxu0 0.0
    %273 = vmatpush.xpose.msra.mxu0 0.0
    %274 = vmatpush.xpose.msra.mxu0 0.0
    %275 = vmatpush.xpose.msra.mxu0 0.0
    %276 = vmatpush.xpose.msra.mxu0 0.0
    %277 = vmatpush.xpose.msra.mxu0 0.0
    %278 = vmatpush.xpose.msra.mxu0 %v261
    %279 = vmatmul.f32.gmra.mxu0 %v258
    %v280 = vpop.f32.mrf.mxu0
    %v281 = vadd.f32 %v255, %v280
    %282 = vdwg.mxu0
    %s283 = scalar_lea.vmem %s8, 2
    %v284 = vld [vmem:[%s283] sm:$0x3]
    %s285 = scalar_lea.vmem %s9, 2
    %v286 = vld [vmem:[%s285] sm:$0x3]
    %288 = vset.pattern.permute.xlu0 0
    %289 = vperm.xlu0 %288, %v286
    %v290 = vpop.permute.xlu0 %289
    %v293 = vsel %vm122, %v284, 0
    %295 = vmatpush.xpose.msra.mxu0 0.0
    %296 = vmatpush.xpose.msra.mxu0 0.0
    %297 = vmatpush.xpose.msra.mxu0 0.0
    %298 = vmatpush.xpose.msra.mxu0 0.0
    %299 = vmatpush.xpose.msra.mxu0 0.0
    %300 = vmatpush.xpose.msra.mxu0 0.0
    %301 = vmatpush.xpose.msra.mxu0 0.0
    %302 = vmatpush.xpose.msra.mxu0 0.0
    %303 = vmatpush.xpose.msra.mxu0 0.0
    %304 = vmatpush.xpose.msra.mxu0 0.0
    %305 = vmatpush.xpose.msra.mxu0 0.0
    %306 = vmatpush.xpose.msra.mxu0 0.0
    %307 = vmatpush.xpose.msra.mxu0 0.0
    %308 = vmatpush.xpose.msra.mxu0 0.0
    %309 = vmatpush.xpose.msra.mxu0 0.0
    %310 = vmatpush.xpose.msra.mxu0 %v261
    %311 = vmatmul.f32.gmra.mxu0 %v293
    %v312 = vpop.f32.mrf.mxu0
    %v313 = vadd.f32 %v290, %v312
    %314 = vdwg.mxu0
    %v315 = vmax.f32 %v246, 0.0
    %v316 = vand.u32 2147483647, %v246
    %v317 = vsub.f32 0.0, %v316
    %v318 = vmul.f32 %v317, 1.442695
    %v319 = vpow.pop %v318
    %v320 = vadd.f32 %v319, 1.0
    %v321 = vlog2.pop %v320
    %v322 = vmul.f32 %v321, 0.6931472
    %v323 = vadd.f32 %v315, %v322
    %v324 = vadd.f32 %v323, 1e-07
    %v325 = vmax.f32 %v313, 0.0
    %v326 = vand.u32 2147483647, %v313
    %v327 = vsub.f32 0.0, %v326
    %v328 = vmul.f32 %v327, 1.442695
    %v329 = vpow.pop %v328
    %v330 = vadd.f32 %v329, 1.0
    %v331 = vlog2.pop %v330
    %v332 = vmul.f32 %v331, 0.6931472
    %v333 = vadd.f32 %v325, %v332
    %v334 = vadd.f32 %v333, 1e-07
    %v335 = vlog2.pop %v324
    %v336 = vmul.f32 %v335, 0.6931472
    %v337 = vlog2.pop %v334
    %v338 = vmul.f32 %v337, 0.6931472
    %v339 = vld [vmem:[#allocation5] sm:$0x3]
    %v340 = vmul.f32 %v324, %v339
    %v341 = vadd.f32 %v216, %v340
    %v342 = vld [vmem:[#allocation7] sm:$0x3]
    %v343 = vmul.f32 %v334, %v342
    %v344 = vadd.f32 %v281, %v343
    %v345 = vsub.f32 %v341, %v216
    %v346 = vrcp.pop %v324
    %v347 = vmul.f32 %v324, %v346
    %v348 = vsub.f32 1.0, %v347
    %v349 = vmul.f32 %v346, %v348
    %v350 = vadd.f32 %v346, %v349
    %vm351 = vweird.f32 %v324
    %vm352 = vweird.f32 %v346
    %vm353 = vmor %vm351, %vm352
    %v354 = vsel %vm353, %v346, %v350
    %v355 = vand.u32 2147483647, %v324
    %vm356 = vcmp.eq.f32.partialorder %v355, 8.507059e+37
    %v357 = vand.u32 %v324, 2147483648
    %v358 = vor.u32 1.1754944e-38, %v357
    %v359 = vsel %vm356, %v358, %v354
    %v360 = vmul.f32 %v345, %v359
    %v361 = vmul.f32 %v360, -0.5
    %v362 = vmul.f32 %v361, %v360
    %v363 = vsub.f32 %v362, %v336
    %v364 = vsub.f32 %v363, 0.9189385
    %vm365 = vcmask 58368
    %v366 = vsel %vm365, %v364, 0.0
    %v367 = vrot.slane %v366, 4
    %v368 = vadd.f32 %v366, %v367
    %v369 = vrot.slane %v368, 2
    %v370 = vadd.f32 %v368, %v369
    %v371 = vrot.slane %v370, 1
    %v372 = vadd.f32 %v370, %v371
    %v373 = vsub.f32 %v341, %v281
    %v374 = vrcp.pop %v334
    %v375 = vmul.f32 %v334, %v374
    %v376 = vsub.f32 1.0, %v375
    %v377 = vmul.f32 %v374, %v376
    %v378 = vadd.f32 %v374, %v377
    %vm379 = vweird.f32 %v334
    %vm380 = vweird.f32 %v374
    %vm381 = vmor %vm379, %vm380
    %v382 = vsel %vm381, %v374, %v378
    %v383 = vand.u32 2147483647, %v334
    %vm384 = vcmp.eq.f32.partialorder %v383, 8.507059e+37
    %v385 = vand.u32 %v334, 2147483648
    %v386 = vor.u32 1.1754944e-38, %v385
    %v387 = vsel %vm384, %v386, %v382
    %v388 = vmul.f32 %v373, %v387
    %v389 = vmul.f32 %v388, -0.5
    %v390 = vmul.f32 %v389, %v388
    %v391 = vsub.f32 %v390, %v338
    %v392 = vsub.f32 %v391, 0.9189385
    %v393 = vsel %vm365, %v392, 0.0
    %v394 = vrot.slane %v393, 4
    %v395 = vadd.f32 %v393, %v394
    %v396 = vrot.slane %v395, 2
    %v397 = vadd.f32 %v395, %v396
    %v398 = vrot.slane %v397, 1
    %v399 = vadd.f32 %v397, %v398
    %v400 = vsub.f32 %v372, %v399
    %v401 = vsub.f32 %v344, %v281
    %v402 = vmul.f32 %v401, %v387
    %v403 = vmul.f32 %v402, -0.5
    %v404 = vmul.f32 %v403, %v402
    %v405 = vsub.f32 %v404, %v338
    %v406 = vsub.f32 %v405, 0.9189385
    %v407 = vsel %vm365, %v406, 0.0
    %v408 = vrot.slane %v407, 4
    %v409 = vadd.f32 %v407, %v408
    %v410 = vrot.slane %v409, 2
    %v411 = vadd.f32 %v409, %v410
    %v412 = vrot.slane %v411, 1
    %v413 = vadd.f32 %v411, %v412
    %v414 = vsub.f32 %v344, %v216
    %v415 = vmul.f32 %v414, %v359
    %v416 = vmul.f32 %v415, -0.5
    %v417 = vmul.f32 %v416, %v415
    %v418 = vsub.f32 %v417, %v336
    %v419 = vsub.f32 %v418, 0.9189385
    %v420 = vsel %vm365, %v419, 0.0
    %v421 = vrot.slane %v420, 4
    %v422 = vadd.f32 %v420, %v421
    %v423 = vrot.slane %v422, 2
    %v424 = vadd.f32 %v422, %v423
    %v425 = vrot.slane %v424, 1
    %v426 = vadd.f32 %v424, %v425
    %v427 = vsub.f32 %v413, %v426
    %v428 = vadd.f32 %v400, %v427
    %v429 = vmul.f32 %v428, 0.5
    %v430 = vsub.f32 0.0, %v429
    %v431 = vmul.f32 %v430, 1.442695
    %v432 = vpow.pop %v431
    %v433 = vadd.f32 %v432, 1.0
    %v434 = vrcp.pop %v433
    %v435 = vmul.f32 %v433, %v434
    %v436 = vsub.f32 1.0, %v435
    %v437 = vmul.f32 %v434, %v436
    %v438 = vadd.f32 %v434, %v437
    %vm439 = vweird.f32 %v433
    %vm440 = vweird.f32 %v434
    %vm441 = vmor %vm439, %vm440
    %v442 = vsel %vm441, %v434, %v438
    %v443 = vand.u32 2147483647, %v433
    %vm444 = vcmp.eq.f32.partialorder %v443, 8.507059e+37
    %v445 = vand.u32 %v433, 2147483648
    %v446 = vor.u32 1.1754944e-38, %v445
    %v447 = vsel %vm444, %v446, %v442
    %v448 = vmul.f32 1.0, %v447
    %vm449 = vcmask 57344
    %450 = vst.msk [vmem:[#allocation11] sm:$0x1] %vm449, %v448
    // Predicated region
    $region62: #{tpu_custom_call.1} parent=1 // pred_check
      _
    $region63: #{tpu_custom_call.1} parent=1 // pred_check_branch
      %452 = sbr.rel (0) target = $region65
    $region64: #{tpu_custom_call.1} parent=1 // pred_region
      %454 = vsyncadd [#allocation4], 0
      %s456 = sshll.u32 [#allocation11], 4
      %s457 = int_to_ptr.vmem [resolvable:$true] %s456
      %s458 = sshll.u32 %s10, 4
      %s459 = int_to_ptr.hbm [resolvable:$true] %s458
      %461 = dma.vmem_to_hbm [thread:$0]  %s457, 16, %s459, [#allocation4]
    $region65: #{tpu_custom_call.1} parent=1 // pred_fallthru
      _
    // Predicated region
    $region66: #{tpu_custom_call.1} parent=1 // pred_check
      _
    $region67: #{tpu_custom_call.1} parent=1 // pred_check_branch
      %463 = sbr.rel (0) target = $region69
    $region68: #{tpu_custom_call.1} parent=1 // pred_region
      %465 = dma.done [#allocation4], 16
    $region69: #{tpu_custom_call.1} parent=1 // pred_fallthru
      _
    %466 = vsyncpa [#allocation3], 1
    %467 = vsyncpa [#allocation6], 1
    %468 = vsyncpa [#allocation9], 1
    %469 = vsyncpa [#allocation4], 1

</llo_original>
